<compile_context>
chip_gen: v7x
topology: tpu7x:2x2x1
jax: 0.10.0
libtpu: 0.0.40
codegen_flags: <defaults>
</compile_context>

<pallas_src>
import functools

import jax
import jax.numpy as jnp
from jax import lax
from jax.experimental import pallas as pl
from jax.experimental.pallas import tpu as pltpu

LIM_DOWN = -10.0
LIM_UP = 10.0


def _round_up(x, m):
    return ((x + m - 1) // m) * m


def classifier_fwd_kernel(x_ref, w1_ref, b1_ref, w2_ref, b2_ref, w3_ref, b3_ref,
                          o_ref, *, bf16_epilogue):
    # x tile: [TB, D] (rows = batch). Cast to bf16 for native-rate MXU only if the
    # producer did not already deliver bf16.
    x = x_ref[...]
    if x.dtype != jnp.bfloat16:
        x = x.astype(jnp.bfloat16)

    # h1^T = relu(W1 @ x^T + b1): contract the feature dim of both operands
    # (no materialized transpose), f32 MXU accumulation.
    h1 = lax.dot_general(w1_ref[...], x, (((1,), (1,)), ((), ())),
                         preferred_element_type=jnp.float32)          # [H1, TB] f32
    if bf16_epilogue:
        # bf16 VALU epilogue (v6e/v7x): one cast of the accumulator, bias+ReLU in
        # bf16, and the result feeds mm2 directly (no separate repack pass).
        h1 = jnp.maximum(h1.astype(jnp.bfloat16) + b1_ref[...].astype(jnp.bfloat16), 0.0)
    else:
        # v5e: no bf16 VPU -> keep elementwise in f32, pack once for mm2.
        h1 = jnp.maximum(h1 + b1_ref[...], 0.0).astype(jnp.bfloat16)  # [H1, TB] bf16

    # h2^T = relu(W2 @ h1^T + b2)
    h2 = jnp.dot(w2_ref[...], h1, preferred_element_type=jnp.float32)  # [H2, TB] f32
    if bf16_epilogue:
        h2 = jnp.maximum(h2.astype(jnp.bfloat16) + b2_ref[...].astype(jnp.bfloat16), 0.0)
    else:
        h2 = jnp.maximum(h2 + b2_ref[...], 0.0).astype(jnp.bfloat16)   # [H2, TB] bf16

    # OUT=1 head on the MXU (it is far from saturated at these K): [1,64]@[64,TB].
    y = jnp.dot(w3_ref[...], h2, preferred_element_type=jnp.float32) + b3_ref[...]  # [1, TB]

    o_ref[...] = jnp.clip(y, LIM_DOWN, LIM_UP).astype(o_ref.dtype)


@functools.partial(jax.jit, static_argnames=("block_b", "bf16_epilogue"))
def _classifier_forward_impl(x, params, *, block_b, bf16_epilogue):
    B, D = x.shape
    w1, b1 = params["w1"], params["b1"]
    w2, b2 = params["w2"], params["b2"]
    w3, b3 = params["w3"], params["b3"]
    H1, H2 = w1.shape[0], w2.shape[0]

    # Tile selection:
    #  * multi-tile path requires tb % 128 == 0 (lane-dense (1, tb) output blocks),
    #  * mid-size batches split into >=2 tiles so v7x's 2 TCs both get work,
    #  * tiny batches collapse to a single tile equal to the (8-aligned) padded batch
    #    (legal because the block then equals the full array dim).
    block_b = max(128, _round_up(block_b, 128))
    if B > block_b:
        tb = block_b
    elif B >= 1024:
        tb = _round_up(pl.cdiv(B, 2), 128)          # exactly 2 tiles
    else:
        tb = _round_up(B, 8)                        # single tile == full padded dim
    b_pad = _round_up(B, tb)
    if b_pad != B:
        x = jnp.pad(x, ((0, b_pad - B), (0, 0)))    # zero rows; sliced off below
    num_tiles = b_pad // tb

    resident = lambda shape: pl.BlockSpec(shape, lambda i: (0, 0))

    flops = 2 * b_pad * (D * H1 + H1 * H2 + H2)
    bytes_accessed = (
        b_pad * D * x.dtype.itemsize + b_pad * 4
        + w1.size * w1.dtype.itemsize + w2.size * w2.dtype.itemsize
        + w3.size * w3.dtype.itemsize
        + (b1.size + b2.size + b3.size) * 4)

    out = pl.pallas_call(
        functools.partial(classifier_fwd_kernel, bf16_epilogue=bf16_epilogue),
        out_shape=jax.ShapeDtypeStruct((1, b_pad), jnp.float32),
        grid_spec=pltpu.PrefetchScalarGridSpec(
            num_scalar_prefetch=0,
            grid=(num_tiles,),
            in_specs=[
                pl.BlockSpec((tb, D), lambda i: (i, 0)),    # x: tiled over batch rows
                resident((H1, D)), resident((H1, 1)),       # W1, b1 (VMEM-resident)
                resident((H2, H1)), resident((H2, 1)),      # W2, b2
                resident((1, H2)), resident((1, 1)),        # W3, b3
            ],
            out_specs=pl.BlockSpec((1, tb), lambda i: (0, i)),   # lane-dense output slab
        ),
        compiler_params=pltpu.CompilerParams(
            dimension_semantics=("parallel",),   # shard batch tiles across v7x's 2 TCs
            vmem_limit_bytes=32 * 1024 * 1024,   # safe on v5e/v6e/v7x
        ),
        cost_estimate=pl.CostEstimate(
            flops=flops, transcendentals=0, bytes_accessed=bytes_accessed),
    )(x, w1, b1, w2, b2, w3, b3)

    return out[0, :B][:, None]   # -> (B, 1), matching the torch module's output shape


def classifier_forward(x, params, *, block_b=8192, bf16_epilogue=None):
    """x: [B, obs_dim] float32 or bfloat16 (bf16 preferred on v5e: halves the HBM stream).

    params: dict with bf16 [out, in] weights w1/w2/w3 and f32 [out, 1] biases b1/b2/b3.
    bf16_epilogue=None auto-selects: bf16 bias/ReLU on v6e/v7x, f32 on v5e (no bf16 VPU).
    """
    if bf16_epilogue is None:
        try:
            kind = jax.devices()[0].device_kind.lower()
        except Exception:
            kind = ""
        bf16_epilogue = "v5" not in kind
    return _classifier_forward_impl(x, params, block_b=block_b,
                                    bf16_epilogue=bool(bf16_epilogue))


def init_params(key, obs_dim):
    """Mimics torch.nn.Linear default init U(-1/sqrt(fan_in), 1/sqrt(fan_in)).

    Weights stored in native [out, in] layout as bf16 (MXU operands, including the
    [1, 64] head); biases f32 [out, 1] (lane-broadcast against [out, TB] activations).
    """
    dims = [(obs_dim, 128), (128, 64), (64, 1)]
    params = {}
    for i, (fan_in, fan_out) in enumerate(dims, start=1):
        key, kw, kb = jax.random.split(key, 3)
        bound = 1.0 / (float(fan_in) ** 0.5)
        w = jax.random.uniform(kw, (fan_out, fan_in), jnp.float32, -bound, bound)
        b = jax.random.uniform(kb, (fan_out, 1), jnp.float32, -bound, bound)
        params[f"w{i}"] = w.astype(jnp.bfloat16)
        params[f"b{i}"] = b
    return params


def reference_forward(x, p, *, bf16_epilogue):
    """Pure-JAX reference matching the kernel's numerics."""
    xb = x.astype(jnp.bfloat16)
    h1 = lax.dot_general(p["w1"], xb, (((1,), (1,)), ((), ())),
                         preferred_element_type=jnp.float32)
    if bf16_epilogue:
        h1 = jnp.maximum(h1.astype(jnp.bfloat16) + p["b1"].astype(jnp.bfloat16), 0.0)
    else:
        h1 = jnp.maximum(h1 + p["b1"], 0.0).astype(jnp.bfloat16)
    h2 = jnp.dot(p["w2"], h1, preferred_element_type=jnp.float32)
    if bf16_epilogue:
        h2 = jnp.maximum(h2.astype(jnp.bfloat16) + p["b2"].astype(jnp.bfloat16), 0.0)
    else:
        h2 = jnp.maximum(h2 + p["b2"], 0.0).astype(jnp.bfloat16)
    y = jnp.dot(p["w3"], h2, preferred_element_type=jnp.float32) + p["b3"]
    return jnp.clip(y, LIM_DOWN, LIM_UP).T   # -> (B, 1)


def reference_forward_f32(x, p):
    """Full-f32 reference with the original PyTorch semantics (row-major)."""
    w1 = p["w1"].astype(jnp.float32)
    w2 = p["w2"].astype(jnp.float32)
    w3 = p["w3"].astype(jnp.float32)
    h1 = jnp.maximum(x @ w1.T + p["b1"].T, 0.0)
    h2 = jnp.maximum(h1 @ w2.T + p["b2"].T, 0.0)
    y = h2 @ w3.T + p["b3"].T
    return jnp.clip(y, LIM_DOWN, LIM_UP)


if __name__ == "__main__":
    OBS_DIM = 32
    key = jax.random.PRNGKey(0)
    kparams, kx1, kx2 = jax.random.split(key, 3)
    params = init_params(kparams, OBS_DIM)

    try:
        _kind = jax.devices()[0].device_kind.lower()
    except Exception:
        _kind = ""
    bf16_ep = "v5" not in _kind

    # 1) Small single-tile case (block equals full padded batch dim).
    x_small = jax.random.normal(kx1, (8, OBS_DIM), jnp.float32)
    out_small = jax.block_until_ready(classifier_forward(x_small, params))
    assert out_small.shape == (8, 1)
    ref_small = reference_forward(x_small, params, bf16_epilogue=bf16_ep)
    assert jnp.allclose(out_small, ref_small, atol=2e-3, rtol=2e-3), \
        float(jnp.max(jnp.abs(out_small - ref_small)))

    # 2) Multi-tile case exercising the batch grid + remainder padding
    #    (block_b=128 -> grid=(2,), lane-dense (1, 128) output blocks).
    x_big = jax.random.normal(kx2, (200, OBS_DIM), jnp.float32)
    out_big = jax.block_until_ready(classifier_forward(x_big, params, block_b=128))
    assert out_big.shape == (200, 1)
    ref_big = reference_forward(x_big, params, bf16_epilogue=bf16_ep)
    assert jnp.allclose(out_big, ref_big, atol=2e-3, rtol=2e-3), \
        float(jnp.max(jnp.abs(out_big - ref_big)))

    # 3) Producer-delivered bf16 x (the recommended v5e contract): same result,
    #    half the dominant HBM stream.
    out_bf16 = jax.block_until_ready(
        classifier_forward(x_big.astype(jnp.bfloat16), params, block_b=128))
    assert jnp.allclose(out_bf16, out_big, atol=1e-5, rtol=1e-5)

    # Sanity vs the full-f32 PyTorch-semantics reference (loose tol due to bf16 MXU inputs).
    max_diff = float(jnp.max(jnp.abs(out_big - reference_forward_f32(x_big, params))))
    assert max_diff < 1e-1, f"bf16 deviation too large: {max_diff}"

    print("KERNEL_OK")
</pallas_src>

<mosaic_0001>
module attributes {stable_mosaic.version = 11 : i64} {
  func.func @classifier_fwd_kernel(%arg0: i32, %arg1: memref<8x32xf32, #tpu.memory_space<vmem>>, %arg2: memref<128x32xbf16, #tpu.memory_space<vmem>>, %arg3: memref<128x1xf32, #tpu.memory_space<vmem>>, %arg4: memref<64x128xbf16, #tpu.memory_space<vmem>>, %arg5: memref<64x1xf32, #tpu.memory_space<vmem>>, %arg6: memref<1x64xbf16, #tpu.memory_space<vmem>>, %arg7: memref<1x1xf32, #tpu.memory_space<vmem>>, %arg8: memref<1x8xf32, #tpu.memory_space<vmem>>) attributes {dimension_semantics = [#tpu.dimension_semantics<parallel>], iteration_bounds = array<i64: 1>, scalar_prefetch = 0 : i64, scratch_operands = 0 : i64, tpu.core_type = #tpu.core_type<tc>, window_params = [{transform_indices = @transform_0, window_bounds = array<i64: 8, 32>}, {pipeline_mode = #tpu.pipeline_mode<synchronous>, transform_indices = @transform_1, window_bounds = array<i64: 128, 32>}, {pipeline_mode = #tpu.pipeline_mode<synchronous>, transform_indices = @transform_2, window_bounds = array<i64: 128, 1>}, {pipeline_mode = #tpu.pipeline_mode<synchronous>, transform_indices = @transform_3, window_bounds = array<i64: 64, 128>}, {pipeline_mode = #tpu.pipeline_mode<synchronous>, transform_indices = @transform_4, window_bounds = array<i64: 64, 1>}, {pipeline_mode = #tpu.pipeline_mode<synchronous>, transform_indices = @transform_5, window_bounds = array<i64: 1, 64>}, {pipeline_mode = #tpu.pipeline_mode<synchronous>, transform_indices = @transform_6, window_bounds = array<i64: 1, 1>}, {transform_indices = @transform_7, window_bounds = array<i64: 1, 8>}]} {
    %c0 = arith.constant 0 : index
    %c0_0 = arith.constant 0 : index
    %0 = vector.load %arg1[%c0, %c0_0] : memref<8x32xf32, #tpu.memory_space<vmem>>, vector<8x32xf32>
    %1 = arith.truncf %0 : vector<8x32xf32> to vector<8x32xbf16>
    %c0_1 = arith.constant 0 : index
    %c0_2 = arith.constant 0 : index
    %2 = vector.load %arg2[%c0_1, %c0_2] : memref<128x32xbf16, #tpu.memory_space<vmem>>, vector<128x32xbf16>
    %cst = arith.constant dense<0.000000e+00> : vector<128x8xf32>
    %3 = tpu.matmul %2, %1, %cst {dimension_numbers = #tpu.dot_dimension_numbers<[1], [1], [0], [0], [0, 0, 1, 0], [], []>} : vector<128x32xbf16>, vector<8x32xbf16>, vector<128x8xf32> -> vector<128x8xf32>
    %4 = arith.truncf %3 : vector<128x8xf32> to vector<128x8xbf16>
    %c0_3 = arith.constant 0 : index
    %c0_4 = arith.constant 0 : index
    %5 = vector.load %arg3[%c0_3, %c0_4] : memref<128x1xf32, #tpu.memory_space<vmem>>, vector<128x1xf32>
    %6 = arith.truncf %5 : vector<128x1xf32> to vector<128x1xbf16>
    %7 = vector.broadcast %6 : vector<128x1xbf16> to vector<128x8xbf16>
    %8 = arith.addf %4, %7 : vector<128x8xbf16>
    %cst_5 = arith.constant 0.000000e+00 : bf16
    %9 = vector.broadcast %cst_5 : bf16 to vector<128x8xbf16>
    %10 = arith.maximumf %8, %9 : vector<128x8xbf16>
    %c0_6 = arith.constant 0 : index
    %c0_7 = arith.constant 0 : index
    %11 = vector.load %arg4[%c0_6, %c0_7] : memref<64x128xbf16, #tpu.memory_space<vmem>>, vector<64x128xbf16>
    %cst_8 = arith.constant dense<0.000000e+00> : vector<64x8xf32>
    %12 = tpu.matmul %11, %10, %cst_8 {dimension_numbers = #tpu.dot_dimension_numbers<[1], [0], [0], [1], [0, 0, 1, 1], [], []>} : vector<64x128xbf16>, vector<128x8xbf16>, vector<64x8xf32> -> vector<64x8xf32>
    %13 = arith.truncf %12 : vector<64x8xf32> to vector<64x8xbf16>
    %c0_9 = arith.constant 0 : index
    %c0_10 = arith.constant 0 : index
    %14 = vector.load %arg5[%c0_9, %c0_10] : memref<64x1xf32, #tpu.memory_space<vmem>>, vector<64x1xf32>
    %15 = arith.truncf %14 : vector<64x1xf32> to vector<64x1xbf16>
    %16 = vector.broadcast %15 : vector<64x1xbf16> to vector<64x8xbf16>
    %17 = arith.addf %13, %16 : vector<64x8xbf16>
    %cst_11 = arith.constant 0.000000e+00 : bf16
    %18 = vector.broadcast %cst_11 : bf16 to vector<64x8xbf16>
    %19 = arith.maximumf %17, %18 : vector<64x8xbf16>
    %c0_12 = arith.constant 0 : index
    %c0_13 = arith.constant 0 : index
    %20 = vector.load %arg6[%c0_12, %c0_13] : memref<1x64xbf16, #tpu.memory_space<vmem>>, vector<1x64xbf16>
    %cst_14 = arith.constant dense<0.000000e+00> : vector<1x8xf32>
    %21 = tpu.matmul %20, %19, %cst_14 {dimension_numbers = #tpu.dot_dimension_numbers<[1], [0], [0], [1], [0, 0, 1, 1], [], []>} : vector<1x64xbf16>, vector<64x8xbf16>, vector<1x8xf32> -> vector<1x8xf32>
    %c0_15 = arith.constant 0 : index
    %c0_16 = arith.constant 0 : index
    %22 = vector.load %arg7[%c0_15, %c0_16] : memref<1x1xf32, #tpu.memory_space<vmem>>, vector<1x1xf32>
    %23 = vector.broadcast %22 : vector<1x1xf32> to vector<1x8xf32>
    %24 = arith.addf %21, %23 : vector<1x8xf32>
    %cst_17 = arith.constant -1.000000e+01 : f32
    %cst_18 = arith.constant 1.000000e+01 : f32
    %25 = vector.broadcast %cst_17 : f32 to vector<1x8xf32>
    %26 = arith.maximumf %25, %24 : vector<1x8xf32>
    %27 = vector.broadcast %cst_18 : f32 to vector<1x8xf32>
    %28 = arith.minimumf %27, %26 : vector<1x8xf32>
    %c0_19 = arith.constant 0 : index
    %c0_20 = arith.constant 0 : index
    %29 = vector.load %arg8[%c0_19, %c0_20] : memref<1x8xf32, #tpu.memory_space<vmem>>, vector<1x8xf32>
    tpu.vector_store %arg8[%c0_19, %c0_20], %28 {strides = array<i32>} : memref<1x8xf32, #tpu.memory_space<vmem>>, vector<1x8xf32>,
    return
  }
  func.func @transform_0(%arg0: i32) -> (i32, i32) {
    %c0_i32 = arith.constant 0 : i32
    %c0_i32_0 = arith.constant 0 : i32
    return %arg0, %c0_i32 : i32, i32
  }
  func.func @transform_1(%arg0: i32) -> (i32, i32) {
    %c0_i32 = arith.constant 0 : i32
    %c0_i32_0 = arith.constant 0 : i32
    %c0_i32_1 = arith.constant 0 : i32
    return %c0_i32, %c0_i32_0 : i32, i32
  }
  func.func @transform_2(%arg0: i32) -> (i32, i32) {
    %c0_i32 = arith.constant 0 : i32
    %c0_i32_0 = arith.constant 0 : i32
    %c0_i32_1 = arith.constant 0 : i32
    return %c0_i32, %c0_i32_0 : i32, i32
  }
  func.func @transform_3(%arg0: i32) -> (i32, i32) {
    %c0_i32 = arith.constant 0 : i32
    %c0_i32_0 = arith.constant 0 : i32
    %c0_i32_1 = arith.constant 0 : i32
    return %c0_i32, %c0_i32_0 : i32, i32
  }
  func.func @transform_4(%arg0: i32) -> (i32, i32) {
    %c0_i32 = arith.constant 0 : i32
    %c0_i32_0 = arith.constant 0 : i32
    %c0_i32_1 = arith.constant 0 : i32
    return %c0_i32, %c0_i32_0 : i32, i32
  }
  func.func @transform_5(%arg0: i32) -> (i32, i32) {
    %c0_i32 = arith.constant 0 : i32
    %c0_i32_0 = arith.constant 0 : i32
    %c0_i32_1 = arith.constant 0 : i32
    return %c0_i32, %c0_i32_0 : i32, i32
  }
  func.func @transform_6(%arg0: i32) -> (i32, i32) {
    %c0_i32 = arith.constant 0 : i32
    %c0_i32_0 = arith.constant 0 : i32
    %c0_i32_1 = arith.constant 0 : i32
    return %c0_i32, %c0_i32_0 : i32, i32
  }
  func.func @transform_7(%arg0: i32) -> (i32, i32) {
    %c0_i32 = arith.constant 0 : i32
    %c0_i32_0 = arith.constant 0 : i32
    return %c0_i32, %arg0 : i32, i32
  }
}

</mosaic_0001>

<llo_original>
// kernel: _classifier_forward_impl.1
$region0: #{_classifier_forward_impl.1}
  #allocation0 [shape = 'u32[]', space=smem, size = 0x4, offset = 0x4, fixed_abs, tag = 'smem constant byte address 0x4 - core index']
  #allocation1 [shape = 'u32[144,128]{1,0:T(1,128)}', space=vmem, size = 0x12000, scoped, tag = 'internal scratch']
  #allocation2 [shape = 'f32[1,1]{1,0:T(1,128)S(1)}', space=vmem, size = 0x200, scoped, tag = 'scoped memory for _classifier_forward_impl.1']
  %s0 = inlined_call_operand.vmem [shape: f32[8,32], index: 0, kind: input, shape index: {}]
  %s1 = inlined_call_operand.vmem [shape: bf16[128,32], index: 1, kind: input, shape index: {}]
  %s2 = inlined_call_operand.vmem [shape: f32[128,1], index: 2, kind: input, shape index: {}]
  %s3 = inlined_call_operand.vmem [shape: bf16[64,128], index: 3, kind: input, shape index: {}]
  %s4 = inlined_call_operand.vmem [shape: f32[64,1], index: 4, kind: input, shape index: {}]
  %s5 = inlined_call_operand.vmem [shape: bf16[1,64], index: 5, kind: input, shape index: {}]
  %s6 = inlined_call_operand.<no memory space> [shape: f32[1,1], index: 6, kind: input, shape index: {}]
  %s7 = inlined_call_operand.hbm [shape: f32[1,8], index: 7, kind: output, shape index: {}]
  %s8 = sld [smem:[#allocation0]]
  $region38: #{_classifier_forward_impl.1} parent=0
    _
  %s10 = ssub.s32 1, %s8
  %s11 = scalar_select 0, %s10, %s8
  %v12 = vstv %s6
  %13 = vst [vmem:[#allocation2] sm:$0x1] %v12
  $region1: #{_classifier_forward_impl.1} parent=0
    #allocation3 [shape = 'u8[512]{0}', space=vmem, size = 0x400, scoped, tag = 'output window, operand 0, single buffered']
    #allocation4 [shape = 's32[1]{0}', space=sflag, size = 0x4, scoped, tag = 'scoped memory for _classifier_forward_impl.1']
    %14 = vsyncpa [#allocation4], 0
    // Predicated region
    $region2: #{_classifier_forward_impl.1} parent=1 // pred_check
      _
    $region3: #{_classifier_forward_impl.1} parent=1 // pred_check_branch
      %16 = sbr.rel (0) target = $region5
    $region4: #{_classifier_forward_impl.1} parent=1 // pred_region
      _
    $region5: #{_classifier_forward_impl.1} parent=1 // pred_fallthru
      _
    // Predicated region
    $region6: #{_classifier_forward_impl.1} parent=1 // pred_check
      _
    $region7: #{_classifier_forward_impl.1} parent=1 // pred_check_branch
      %18 = sbr.rel (0) target = $region9
    $region8: #{_classifier_forward_impl.1} parent=1 // pred_region
      _
    $region9: #{_classifier_forward_impl.1} parent=1 // pred_fallthru
      _
    // Predicated region
    $region10: #{_classifier_forward_impl.1} parent=1 // pred_check
      _
    $region11: #{_classifier_forward_impl.1} parent=1 // pred_check_branch
      %20 = sbr.rel (0) target = $region13
    $region12: #{_classifier_forward_impl.1} parent=1 // pred_region
      _
    $region13: #{_classifier_forward_impl.1} parent=1 // pred_fallthru
      _
    // Predicated region
    $region14: #{_classifier_forward_impl.1} parent=1 // pred_check
      _
    $region15: #{_classifier_forward_impl.1} parent=1 // pred_check_branch
      %22 = sbr.rel (0) target = $region17
    $region16: #{_classifier_forward_impl.1} parent=1 // pred_region
      _
    $region17: #{_classifier_forward_impl.1} parent=1 // pred_fallthru
      _
    // Predicated region
    $region18: #{_classifier_forward_impl.1} parent=1 // pred_check
      _
    $region19: #{_classifier_forward_impl.1} parent=1 // pred_check_branch
      %24 = sbr.rel (0) target = $region21
    $region20: #{_classifier_forward_impl.1} parent=1 // pred_region
      _
    $region21: #{_classifier_forward_impl.1} parent=1 // pred_fallthru
      _
    // Predicated region
    $region22: #{_classifier_forward_impl.1} parent=1 // pred_check
      _
    $region23: #{_classifier_forward_impl.1} parent=1 // pred_check_branch
      %26 = sbr.rel (0) target = $region25
    $region24: #{_classifier_forward_impl.1} parent=1 // pred_region
      _
    $region25: #{_classifier_forward_impl.1} parent=1 // pred_fallthru
      _
    // Predicated region
    $region26: #{_classifier_forward_impl.1} parent=1 // pred_check
      _
    $region27: #{_classifier_forward_impl.1} parent=1 // pred_check_branch
      %28 = sbr.rel (0) target = $region29
    $region28: #{_classifier_forward_impl.1} parent=1 // pred_region
      _
    $region29: #{_classifier_forward_impl.1} parent=1 // pred_fallthru
      _
    %v30 = vld [vmem:[%s0] sm:$0xff]
    %v31 = vpack.c.bf16 %v30, %v30
    %v32 = vld [vmem:[%s1] sm:$0xf]
    %v33 = vld [vmem:[%s1 + $0x4] sm:$0xf]
    %v34 = vld [vmem:[%s1 + $0x8] sm:$0xf]
    %v35 = vld [vmem:[%s1 + $0xc] sm:$0xf]
    %v36 = vld [vmem:[%s1 + $0x10] sm:$0xf]
    %v37 = vld [vmem:[%s1 + $0x14] sm:$0xf]
    %v38 = vld [vmem:[%s1 + $0x18] sm:$0xf]
    %v39 = vld [vmem:[%s1 + $0x1c] sm:$0xf]
    %v40 = vld [vmem:[%s1 + $0x20] sm:$0xf]
    %v41 = vld [vmem:[%s1 + $0x24] sm:$0xf]
    %v42 = vld [vmem:[%s1 + $0x28] sm:$0xf]
    %v43 = vld [vmem:[%s1 + $0x2c] sm:$0xf]
    %v44 = vld [vmem:[%s1 + $0x30] sm:$0xf]
    %v45 = vld [vmem:[%s1 + $0x34] sm:$0xf]
    %v46 = vld [vmem:[%s1 + $0x38] sm:$0xf]
    %v47 = vld [vmem:[%s1 + $0x3c] sm:$0xf]
    %v64 = vunpack.c.l.b16 %v32
    %v65 = vunpack.c.l.b16 %v33
    %v66 = vunpack.c.l.b16 %v34
    %v67 = vunpack.c.l.b16 %v35
    %v68 = vunpack.c.l.b16 %v36
    %v69 = vunpack.c.l.b16 %v37
    %v70 = vunpack.c.l.b16 %v38
    %v71 = vunpack.c.l.b16 %v39
    %v72 = vunpack.c.l.b16 %v40
    %v73 = vunpack.c.l.b16 %v41
    %v74 = vunpack.c.l.b16 %v42
    %v75 = vunpack.c.l.b16 %v43
    %v76 = vunpack.c.l.b16 %v44
    %v77 = vunpack.c.l.b16 %v45
    %v78 = vunpack.c.l.b16 %v46
    %v79 = vunpack.c.l.b16 %v47
    %v80 = vpack.c.b16 %v65, %v64
    %v81 = vpack.c.b16 %v67, %v66
    %v82 = vpack.c.b16 %v69, %v68
    %v83 = vpack.c.b16 %v71, %v70
    %v84 = vpack.c.b16 %v73, %v72
    %v85 = vpack.c.b16 %v75, %v74
    %v86 = vpack.c.b16 %v77, %v76
    %v87 = vpack.c.b16 %v79, %v78
    %vm88 = vcmask 261120
    %v90 = vsel %vm88, %v80, 0
    %v93 = vsel %vm88, %v81, 0
    %v96 = vsel %vm88, %v82, 0
    %v99 = vsel %vm88, %v83, 0
    %v102 = vsel %vm88, %v84, 0
    %v105 = vsel %vm88, %v85, 0
    %v108 = vsel %vm88, %v86, 0
    %v111 = vsel %vm88, %v87, 0
    %v114 = vsel %vm88, %v31, 0
    %116 = vmatprep.subr.bf16.mxu0 0
    %117 = vmatpush1.bf16.xpose.msra.mxu0 %v114
    %118 = vmatprep.subr.bf16.mxu0 0
    %119 = vmatpush1.bf16.xpose.msra.mxu0 0
    %120 = vmatprep.subr.bf16.mxu0 0
    %121 = vmatpush1.bf16.xpose.msra.mxu0 0
    %122 = vmatprep.subr.bf16.mxu0 0
    %123 = vmatpush1.bf16.xpose.msra.mxu0 0
    %124 = vmatprep.subr.bf16.mxu0 0
    %125 = vmatpush1.bf16.xpose.msra.mxu0 0
    %126 = vmatprep.subr.bf16.mxu0 0
    %127 = vmatpush1.bf16.xpose.msra.mxu0 0
    %128 = vmatprep.subr.bf16.mxu0 0
    %129 = vmatpush1.bf16.xpose.msra.mxu0 0
    %130 = vmatprep.subr.bf16.mxu0 0
    %131 = vmatpush1.bf16.xpose.msra.mxu0 0
    %132 = vmatprep.subr.bf16.mxu0 0
    %133 = vmatpush1.bf16.xpose.msra.mxu0 0
    %134 = vmatprep.subr.bf16.mxu0 0
    %135 = vmatpush1.bf16.xpose.msra.mxu0 0
    %136 = vmatprep.subr.bf16.mxu0 0
    %137 = vmatpush1.bf16.xpose.msra.mxu0 0
    %138 = vmatprep.subr.bf16.mxu0 0
    %139 = vmatpush1.bf16.xpose.msra.mxu0 0
    %140 = vmatprep.subr.bf16.mxu0 0
    %141 = vmatpush1.bf16.xpose.msra.mxu0 0
    %142 = vmatprep.subr.bf16.mxu0 0
    %143 = vmatpush1.bf16.xpose.msra.mxu0 0
    %144 = vmatprep.subr.bf16.mxu0 0
    %145 = vmatpush1.bf16.xpose.msra.mxu0 0
    %146 = vmatprep.subr.bf16.mxu0 0
    %147 = vmatpush1.bf16.xpose.msra.mxu0 0
    %148 = vmatprep.mubr.bf16.mxu0 0
    %149 = vmatmul.mubr.bf16.gmra.mrb[0].mxu0 %v90
    %v150 = vpop.f32.mrb[0].mxu0
    %v151 = vadd.f32 0.0, %v150
    %v152 = vpop.f32.mrb[0].mxu0
    %v153 = vpop.f32.mrb[0].mxu0
    %v154 = vadd.f32 0.0, %v153
    %v155 = vpop.f32.mrb[0].mxu0
    %156 = vmatprep.mubr.bf16.mxu0 0
    %157 = vmatmul.mubr.bf16.gmra.mrb[0].mxu0 %v93
    %v158 = vpop.f32.mrb[0].mxu0
    %v159 = vadd.f32 0.0, %v158
    %v160 = vpop.f32.mrb[0].mxu0
    %v161 = vpop.f32.mrb[0].mxu0
    %v162 = vadd.f32 0.0, %v161
    %v163 = vpop.f32.mrb[0].mxu0
    %164 = vmatprep.mubr.bf16.mxu0 0
    %165 = vmatmul.mubr.bf16.gmra.mrb[0].mxu0 %v96
    %v166 = vpop.f32.mrb[0].mxu0
    %v167 = vadd.f32 0.0, %v166
    %v168 = vpop.f32.mrb[0].mxu0
    %v169 = vpop.f32.mrb[0].mxu0
    %v170 = vadd.f32 0.0, %v169
    %v171 = vpop.f32.mrb[0].mxu0
    %172 = vmatprep.mubr.bf16.mxu0 0
    %173 = vmatmul.mubr.bf16.gmra.mrb[0].mxu0 %v99
    %v174 = vpop.f32.mrb[0].mxu0
    %v175 = vadd.f32 0.0, %v174
    %v176 = vpop.f32.mrb[0].mxu0
    %v177 = vpop.f32.mrb[0].mxu0
    %v178 = vadd.f32 0.0, %v177
    %v179 = vpop.f32.mrb[0].mxu0
    %180 = vmatprep.mubr.bf16.mxu0 0
    %181 = vmatmul.mubr.bf16.gmra.mrb[0].mxu0 %v102
    %v182 = vpop.f32.mrb[0].mxu0
    %v183 = vadd.f32 0.0, %v182
    %v184 = vpop.f32.mrb[0].mxu0
    %v185 = vpop.f32.mrb[0].mxu0
    %v186 = vadd.f32 0.0, %v185
    %v187 = vpop.f32.mrb[0].mxu0
    %188 = vmatprep.mubr.bf16.mxu0 0
    %189 = vmatmul.mubr.bf16.gmra.mrb[0].mxu0 %v105
    %v190 = vpop.f32.mrb[0].mxu0
    %v191 = vadd.f32 0.0, %v190
    %v192 = vpop.f32.mrb[0].mxu0
    %v193 = vpop.f32.mrb[0].mxu0
    %v194 = vadd.f32 0.0, %v193
    %v195 = vpop.f32.mrb[0].mxu0
    %196 = vmatprep.mubr.bf16.mxu0 0
    %197 = vmatmul.mubr.bf16.gmra.mrb[0].mxu0 %v108
    %v198 = vpop.f32.mrb[0].mxu0
    %v199 = vadd.f32 0.0, %v198
    %v200 = vpop.f32.mrb[0].mxu0
    %v201 = vpop.f32.mrb[0].mxu0
    %v202 = vadd.f32 0.0, %v201
    %v203 = vpop.f32.mrb[0].mxu0
    %204 = vmatprep.mubr.bf16.mxu0 0
    %205 = vmatmul.mubr.bf16.gmra.mrb[0].mxu0 %v111
    %v206 = vpop.f32.mrb[0].mxu0
    %v207 = vadd.f32 0.0, %v206
    %v208 = vpop.f32.mrb[0].mxu0
    %v209 = vpop.f32.mrb[0].mxu0
    %v210 = vadd.f32 0.0, %v209
    %v211 = vpop.f32.mrb[0].mxu0
    %212 = vdwg.mxu0
    %v213 = vpack.c.bf16 %v154, %v151
    %v214 = vpack.c.bf16 %v162, %v159
    %v215 = vpack.c.bf16 %v170, %v167
    %v216 = vpack.c.bf16 %v178, %v175
    %v217 = vpack.c.bf16 %v186, %v183
    %v218 = vpack.c.bf16 %v194, %v191
    %v219 = vpack.c.bf16 %v202, %v199
    %v220 = vpack.c.bf16 %v210, %v207
    %v221 = vld [vmem:[%s2] sm:$0xff]
    %v222 = vld [vmem:[%s2 + $0x8] sm:$0xff]
    %v223 = vld [vmem:[%s2 + $0x10] sm:$0xff]
    %v224 = vld [vmem:[%s2 + $0x18] sm:$0xff]
    %v225 = vld [vmem:[%s2 + $0x20] sm:$0xff]
    %v226 = vld [vmem:[%s2 + $0x28] sm:$0xff]
    %v227 = vld [vmem:[%s2 + $0x30] sm:$0xff]
    %v228 = vld [vmem:[%s2 + $0x38] sm:$0xff]
    %v229 = vld [vmem:[%s2 + $0x40] sm:$0xff]
    %v230 = vld [vmem:[%s2 + $0x48] sm:$0xff]
    %v231 = vld [vmem:[%s2 + $0x50] sm:$0xff]
    %v232 = vld [vmem:[%s2 + $0x58] sm:$0xff]
    %v233 = vld [vmem:[%s2 + $0x60] sm:$0xff]
    %v234 = vld [vmem:[%s2 + $0x68] sm:$0xff]
    %v235 = vld [vmem:[%s2 + $0x70] sm:$0xff]
    %v236 = vld [vmem:[%s2 + $0x78] sm:$0xff]
    %v237 = vpack.c.bf16 %v222, %v221
    %v238 = vpack.c.bf16 %v224, %v223
    %v239 = vpack.c.bf16 %v226, %v225
    %v240 = vpack.c.bf16 %v228, %v227
    %v241 = vpack.c.bf16 %v230, %v229
    %v242 = vpack.c.bf16 %v232, %v231
    %v243 = vpack.c.bf16 %v234, %v233
    %v244 = vpack.c.bf16 %v236, %v235
    %246 = vset.pattern.permute.xlu0 0
    %247 = vperm.xlu0 %246, %v237
    %v248 = vpop.permute.xlu0 %247
    %251 = vset.pattern.permute.xlu0 0
    %252 = vperm.xlu0 %251, %v238
    %v253 = vpop.permute.xlu0 %252
    %256 = vset.pattern.permute.xlu0 0
    %257 = vperm.xlu0 %256, %v239
    %v258 = vpop.permute.xlu0 %257
    %261 = vset.pattern.permute.xlu0 0
    %262 = vperm.xlu0 %261, %v240
    %v263 = vpop.permute.xlu0 %262
    %266 = vset.pattern.permute.xlu0 0
    %267 = vperm.xlu0 %266, %v241
    %v268 = vpop.permute.xlu0 %267
    %271 = vset.pattern.permute.xlu0 0
    %272 = vperm.xlu0 %271, %v242
    %v273 = vpop.permute.xlu0 %272
    %276 = vset.pattern.permute.xlu0 0
    %277 = vperm.xlu0 %276, %v243
    %v278 = vpop.permute.xlu0 %277
    %281 = vset.pattern.permute.xlu0 0
    %282 = vperm.xlu0 %281, %v244
    %v283 = vpop.permute.xlu0 %282
    %v285 = vadd.bf16 %v213, %v248
    %v286 = vadd.bf16 %v214, %v253
    %v287 = vadd.bf16 %v215, %v258
    %v288 = vadd.bf16 %v216, %v263
    %v289 = vadd.bf16 %v217, %v268
    %v290 = vadd.bf16 %v218, %v273
    %v291 = vadd.bf16 %v219, %v278
    %v292 = vadd.bf16 %v220, %v283
    %v293 = vmax.bf16 %v285, 0
    %v294 = vmax.bf16 %v286, 0
    %v295 = vmax.bf16 %v287, 0
    %v296 = vmax.bf16 %v288, 0
    %v297 = vmax.bf16 %v289, 0
    %v298 = vmax.bf16 %v290, 0
    %v299 = vmax.bf16 %v291, 0
    %v300 = vmax.bf16 %v292, 0
    %v301 = vld [vmem:[%s3] sm:$0xf]
    %v302 = vld [vmem:[%s3 + $0x4] sm:$0xf]
    %v303 = vld [vmem:[%s3 + $0x8] sm:$0xf]
    %v304 = vld [vmem:[%s3 + $0xc] sm:$0xf]
    %v305 = vld [vmem:[%s3 + $0x10] sm:$0xf]
    %v306 = vld [vmem:[%s3 + $0x14] sm:$0xf]
    %v307 = vld [vmem:[%s3 + $0x18] sm:$0xf]
    %v308 = vld [vmem:[%s3 + $0x1c] sm:$0xf]
    %v317 = vunpack.c.l.b16 %v301
    %v318 = vunpack.c.l.b16 %v302
    %v319 = vunpack.c.l.b16 %v303
    %v320 = vunpack.c.l.b16 %v304
    %v321 = vunpack.c.l.b16 %v305
    %v322 = vunpack.c.l.b16 %v306
    %v323 = vunpack.c.l.b16 %v307
    %v324 = vunpack.c.l.b16 %v308
    %v325 = vpack.c.b16 %v318, %v317
    %v326 = vpack.c.b16 %v320, %v319
    %v327 = vpack.c.b16 %v322, %v321
    %v328 = vpack.c.b16 %v324, %v323
    %333 = vmatprep.subr.bf16.mxu0 0
    %334 = vmatpush1.bf16.msra.mxu0 %v293
    %335 = vmatprep.subr.bf16.mxu0 0
    %336 = vmatpush1.bf16.msra.mxu0 %v294
    %337 = vmatprep.subr.bf16.mxu0 0
    %338 = vmatpush1.bf16.msra.mxu0 %v295
    %339 = vmatprep.subr.bf16.mxu0 0
    %340 = vmatpush1.bf16.msra.mxu0 %v296
    %341 = vmatprep.subr.bf16.mxu0 0
    %342 = vmatpush1.bf16.msra.mxu0 %v297
    %343 = vmatprep.subr.bf16.mxu0 0
    %344 = vmatpush1.bf16.msra.mxu0 %v298
    %345 = vmatprep.subr.bf16.mxu0 0
    %346 = vmatpush1.bf16.msra.mxu0 %v299
    %347 = vmatprep.subr.bf16.mxu0 0
    %348 = vmatpush1.bf16.msra.mxu0 %v300
    %349 = vmatprep.subr.bf16.mxu0 0
    %350 = vmatpush1.bf16.msra.mxu0 0
    %351 = vmatprep.subr.bf16.mxu0 0
    %352 = vmatpush1.bf16.msra.mxu0 0
    %353 = vmatprep.subr.bf16.mxu0 0
    %354 = vmatpush1.bf16.msra.mxu0 0
    %355 = vmatprep.subr.bf16.mxu0 0
    %356 = vmatpush1.bf16.msra.mxu0 0
    %357 = vmatprep.subr.bf16.mxu0 0
    %358 = vmatpush1.bf16.msra.mxu0 0
    %359 = vmatprep.subr.bf16.mxu0 0
    %360 = vmatpush1.bf16.msra.mxu0 0
    %361 = vmatprep.subr.bf16.mxu0 0
    %362 = vmatpush1.bf16.msra.mxu0 0
    %363 = vmatprep.subr.bf16.mxu0 0
    %364 = vmatpush1.bf16.msra.mxu0 0
    %365 = vmatprep.mubr.bf16.mxu0 0
    %366 = vmatmul.mubr.bf16.gmra.mrb[0].mxu0 %v325
    %v367 = vpop.f32.mrb[0].mxu0
    %v368 = vadd.f32 0.0, %v367
    %v369 = vpop.f32.mrb[0].mxu0
    %v370 = vpop.f32.mrb[0].mxu0
    %v371 = vadd.f32 0.0, %v370
    %v372 = vpop.f32.mrb[0].mxu0
    %373 = vmatprep.mubr.bf16.mxu0 0
    %374 = vmatmul.mubr.bf16.gmra.mrb[0].mxu0 %v326
    %v375 = vpop.f32.mrb[0].mxu0
    %v376 = vadd.f32 0.0, %v375
    %v377 = vpop.f32.mrb[0].mxu0
    %v378 = vpop.f32.mrb[0].mxu0
    %v379 = vadd.f32 0.0, %v378
    %v380 = vpop.f32.mrb[0].mxu0
    %381 = vmatprep.mubr.bf16.mxu0 0
    %382 = vmatmul.mubr.bf16.gmra.mrb[0].mxu0 %v327
    %v383 = vpop.f32.mrb[0].mxu0
    %v384 = vadd.f32 0.0, %v383
    %v385 = vpop.f32.mrb[0].mxu0
    %v386 = vpop.f32.mrb[0].mxu0
    %v387 = vadd.f32 0.0, %v386
    %v388 = vpop.f32.mrb[0].mxu0
    %389 = vmatprep.mubr.bf16.mxu0 0
    %390 = vmatmul.mubr.bf16.gmra.mrb[0].mxu0 %v328
    %v391 = vpop.f32.mrb[0].mxu0
    %v392 = vadd.f32 0.0, %v391
    %v393 = vpop.f32.mrb[0].mxu0
    %v394 = vpop.f32.mrb[0].mxu0
    %v395 = vadd.f32 0.0, %v394
    %v396 = vpop.f32.mrb[0].mxu0
    %397 = vdwg.mxu0
    %v398 = vpack.c.bf16 %v371, %v368
    %v399 = vpack.c.bf16 %v379, %v376
    %v400 = vpack.c.bf16 %v387, %v384
    %v401 = vpack.c.bf16 %v395, %v392
    %v402 = vld [vmem:[%s4] sm:$0xff]
    %v403 = vld [vmem:[%s4 + $0x8] sm:$0xff]
    %v404 = vld [vmem:[%s4 + $0x10] sm:$0xff]
    %v405 = vld [vmem:[%s4 + $0x18] sm:$0xff]
    %v406 = vld [vmem:[%s4 + $0x20] sm:$0xff]
    %v407 = vld [vmem:[%s4 + $0x28] sm:$0xff]
    %v408 = vld [vmem:[%s4 + $0x30] sm:$0xff]
    %v409 = vld [vmem:[%s4 + $0x38] sm:$0xff]
    %v410 = vpack.c.bf16 %v403, %v402
    %v411 = vpack.c.bf16 %v405, %v404
    %v412 = vpack.c.bf16 %v407, %v406
    %v413 = vpack.c.bf16 %v409, %v408
    %415 = vset.pattern.permute.xlu0 0
    %416 = vperm.xlu0 %415, %v410
    %v417 = vpop.permute.xlu0 %416
    %420 = vset.pattern.permute.xlu0 0
    %421 = vperm.xlu0 %420, %v411
    %v422 = vpop.permute.xlu0 %421
    %425 = vset.pattern.permute.xlu0 0
    %426 = vperm.xlu0 %425, %v412
    %v427 = vpop.permute.xlu0 %426
    %430 = vset.pattern.permute.xlu0 0
    %431 = vperm.xlu0 %430, %v413
    %v432 = vpop.permute.xlu0 %431
    %v434 = vadd.bf16 %v398, %v417
    %v435 = vadd.bf16 %v399, %v422
    %v436 = vadd.bf16 %v400, %v427
    %v437 = vadd.bf16 %v401, %v432
    %v438 = vmax.bf16 %v434, 0
    %v439 = vmax.bf16 %v435, 0
    %v440 = vmax.bf16 %v436, 0
    %v441 = vmax.bf16 %v437, 0
    %v442 = vld [vmem:[%s5] sm:$0x1]
    %v443 = vld [vmem:[#allocation2] sm:$0x1]
    %445 = vset.pattern.permute.xlu0 0
    %446 = vperm.xlu0 %445, %v443
    %v447 = vpop.permute.xlu0 %446
    %v449 = vlaneseq
    %v450 = vshrl.u32 %v449, 7
    %v451 = vsub.s32 0, %v450
    %v452 = vrot.slane %v447, %v451
    %vm453 = vcmask 523264
    %v455 = vsel %vm453, %v442, 0
    %457 = vmatprep.subr.bf16.mxu0 0
    %458 = vmatpush1.bf16.msra.mxu0 %v438
    %459 = vmatprep.subr.bf16.mxu0 0
    %460 = vmatpush1.bf16.msra.mxu0 %v439
    %461 = vmatprep.subr.bf16.mxu0 0
    %462 = vmatpush1.bf16.msra.mxu0 %v440
    %463 = vmatprep.subr.bf16.mxu0 0
    %464 = vmatpush1.bf16.msra.mxu0 %v441
    %465 = vmatprep.subr.bf16.mxu0 0
    %466 = vmatpush1.bf16.msra.mxu0 0
    %467 = vmatprep.subr.bf16.mxu0 0
    %468 = vmatpush1.bf16.msra.mxu0 0
    %469 = vmatprep.subr.bf16.mxu0 0
    %470 = vmatpush1.bf16.msra.mxu0 0
    %471 = vmatprep.subr.bf16.mxu0 0
    %472 = vmatpush1.bf16.msra.mxu0 0
    %473 = vmatprep.subr.bf16.mxu0 0
    %474 = vmatpush1.bf16.msra.mxu0 0
    %475 = vmatprep.subr.bf16.mxu0 0
    %476 = vmatpush1.bf16.msra.mxu0 0
    %477 = vmatprep.subr.bf16.mxu0 0
    %478 = vmatpush1.bf16.msra.mxu0 0
    %479 = vmatprep.subr.bf16.mxu0 0
    %480 = vmatpush1.bf16.msra.mxu0 0
    %481 = vmatprep.subr.bf16.mxu0 0
    %482 = vmatpush1.bf16.msra.mxu0 0
    %483 = vmatprep.subr.bf16.mxu0 0
    %484 = vmatpush1.bf16.msra.mxu0 0
    %485 = vmatprep.subr.bf16.mxu0 0
    %486 = vmatpush1.bf16.msra.mxu0 0
    %487 = vmatprep.subr.bf16.mxu0 0
    %488 = vmatpush1.bf16.msra.mxu0 0
    %489 = vmatprep.mubr.bf16.mxu0 0
    %490 = vmatmul.mubr.bf16.gmra.mrb[0].mxu0 %v455
    %v491 = vpop.f32.mrb[0].mxu0
    %v492 = vadd.f32 %v452, %v491
    %v493 = vpop.f32.mrb[0].mxu0
    %v494 = vpop.f32.mrb[0].mxu0
    %v495 = vpop.f32.mrb[0].mxu0
    %496 = vdwg.mxu0
    %v497 = vmax.f32 %v492, -10.0
    %v498 = vmin.f32 %v497, 10.0
    %vm499 = vcmask 57344
    %500 = vst.msk [vmem:[#allocation3] sm:$0x1] %vm499, %v498
    // Predicated region
    $region30: #{_classifier_forward_impl.1} parent=1 // pred_check
      _
    $region31: #{_classifier_forward_impl.1} parent=1 // pred_check_branch
      %502 = sbr.rel (0) target = $region33
    $region32: #{_classifier_forward_impl.1} parent=1 // pred_region
      %s504 = ssub.s32 16, 16
      %505 = vsyncadd [#allocation4], %s504
      %s507 = sshll.u32 [#allocation3], 4
      %s508 = int_to_ptr.vmem [resolvable:$true] %s507
      %510 = dma.vmem_to_hbm [thread:$0]  %s508, 16, %s7, [#allocation4]
    $region33: #{_classifier_forward_impl.1} parent=1 // pred_fallthru
      _
    // Predicated region
    $region34: #{_classifier_forward_impl.1} parent=1 // pred_check
      _
    $region35: #{_classifier_forward_impl.1} parent=1 // pred_check_branch
      %512 = sbr.rel (0) target = $region37
    $region36: #{_classifier_forward_impl.1} parent=1 // pred_region
      %513 = dma.done [#allocation4], 16
    $region37: #{_classifier_forward_impl.1} parent=1 // pred_fallthru
      _
    %514 = vsyncpa [#allocation4], 1

</llo_original>
